<compile_context>
chip_gen: v6e
topology: v6e:2x2x1
jax: 0.10.0
libtpu: 0.0.40
codegen_flags: <defaults>
</compile_context>

<pallas_src>
import functools

import jax
import jax.numpy as jnp
from jax.experimental import pallas as pl
from jax.experimental.pallas import tpu as pltpu


def _round_up(v, m):
    return ((v + m - 1) // m) * m


def _vmem_capacity_bytes():
    try:
        info = pltpu.get_tpu_info()
        cap = getattr(info, "vmem_capacity_bytes", None)
        if cap:
            return int(cap)
    except Exception:
        pass
    return 64 * 1024 * 1024  # conservative default: v7x per-TensorCore VMEM


# ----------------------------- kernels --------------------------------------


def _pw_relu6_fused_kernel(x_ref, w_ref, b_ref, o_ref):
    """Whole-K step: o = relu6(x @ w + b). No accumulator round-trip."""
    y = jnp.dot(x_ref[...].astype(jnp.bfloat16), w_ref[...],
                preferred_element_type=jnp.float32)
    o_ref[...] = jnp.clip(y + b_ref[...], 0.0, 6.0).astype(o_ref.dtype)


def _pw_relu6_acc_kernel(x_ref, w_ref, b_ref, o_ref, acc_ref):
    """K-tiled step with f32 VMEM accumulator (only for very wide Cin)."""
    k = pl.program_id(1)

    @pl.when(k == 0)
    def _init():
        acc_ref[...] = jnp.zeros_like(acc_ref)

    acc_ref[...] += jnp.dot(x_ref[...].astype(jnp.bfloat16), w_ref[...],
                            preferred_element_type=jnp.float32)

    @pl.when(k == pl.num_programs(1) - 1)
    def _finalize():
        o_ref[...] = jnp.clip(acc_ref[...] + b_ref[...],
                              0.0, 6.0).astype(o_ref.dtype)


# --------------------------- pallas wrapper ----------------------------------


def _pointwise_relu6_impl(x_2d, w, b, tile_m, max_weight_bytes):
    """x_2d: (M, Cin); w: (Cin, Cout) bf16; b: (1, Cout) f32 -> (M, Cout)."""
    M, Cin = x_2d.shape
    Cout = w.shape[1]
    out_dtype = x_2d.dtype
    x_bytes = jnp.dtype(x_2d.dtype).itemsize
    o_bytes = jnp.dtype(out_dtype).itemsize
    w_bytes = jnp.dtype(w.dtype).itemsize

    # K tiling: keep the whole contraction resident unless the weight block is
    # genuinely large (re-streaming the weight per M tile costs num_m x bytes).
    tk = Cin
    if Cin * Cout * w_bytes > max_weight_bytes and Cin % 128 == 0:
        for cand in (512, 256, 128):
            if Cin % cand == 0 and Cin // cand >= 2:
                tk = cand
                break
    num_k = Cin // tk if Cin % tk == 0 else 1  # never tile a ragged contraction
    if num_k == 1:
        tk = Cin

    # Generation-aware VMEM budget (v5e/v6e: 128 MiB; v7x: 64 MiB per TC).
    vmem_cap = _vmem_capacity_bytes()
    budget = int(vmem_cap * 0.70)

    fixed_bytes = 2 * tk * Cout * w_bytes + 2 * Cout * 4
    row_bytes = (2 * tk * x_bytes + 2 * Cout * o_bytes
                 + (4 * Cout if num_k > 1 else 0))

    tile_m = max(8, (int(tile_m) // 8) * 8)
    tm_budget = max(8, ((budget - fixed_bytes) // max(row_bytes, 1)) // 8 * 8)
    tm = min(tile_m, tm_budget)
    if M <= tm:
        # Guarantee >= 2 M-blocks so the "parallel" axis can feed both v7x
        # TensorCores; costs a single ~0.35us extra grid step elsewhere.
        tm = M if M <= 16 else _round_up(-(-M // 2), 8)
    num_m = pl.cdiv(M, tm)

    vmem_need = fixed_bytes + tm * row_bytes
    vmem_limit = int(min(max(vmem_need + 8 * 1024 * 1024, 16 * 1024 * 1024),
                         int(vmem_cap * 0.9)))

    cost = pl.CostEstimate(
        flops=2 * M * Cin * Cout,
        transcendentals=0,
        bytes_accessed=(M * Cin * x_bytes + Cin * Cout * w_bytes + Cout * 4
                        + M * Cout * o_bytes),
    )

    if num_k == 1:
        # Dominant path: resident weights, no accumulator, direct store.
        return pl.pallas_call(
            _pw_relu6_fused_kernel,
            out_shape=jax.ShapeDtypeStruct((M, Cout), out_dtype),
            grid=(num_m,),
            in_specs=[
                pl.BlockSpec((tm, Cin), lambda i: (i, 0)),    # activations
                pl.BlockSpec((Cin, Cout), lambda i: (0, 0)),  # resident bf16 W
                pl.BlockSpec((1, Cout), lambda i: (0, 0)),    # f32 bias
            ],
            out_specs=pl.BlockSpec((tm, Cout), lambda i: (i, 0)),
            compiler_params=pltpu.CompilerParams(
                dimension_semantics=("parallel",),
                vmem_limit_bytes=vmem_limit,
            ),
            cost_estimate=cost,
        )(x_2d, w, b)

    # Wide-Cin fallback: K-tiled with f32 accumulator.
    return pl.pallas_call(
        _pw_relu6_acc_kernel,
        out_shape=jax.ShapeDtypeStruct((M, Cout), out_dtype),
        grid=(num_m, num_k),
        in_specs=[
            pl.BlockSpec((tm, tk), lambda i, k: (i, k)),
            pl.BlockSpec((tk, Cout), lambda i, k: (k, 0)),
            pl.BlockSpec((1, Cout), lambda i, k: (0, 0)),
        ],
        out_specs=pl.BlockSpec((tm, Cout), lambda i, k: (i, 0)),
        scratch_shapes=[pltpu.VMEM((tm, Cout), jnp.float32)],
        compiler_params=pltpu.CompilerParams(
            dimension_semantics=("parallel", "arbitrary"),
            vmem_limit_bytes=vmem_limit,
        ),
        cost_estimate=cost,
    )(x_2d, w, b)


# Differentiable wrapper so jax.checkpoint (remat) has a usable backward.
@functools.partial(jax.custom_vjp, nondiff_argnums=(3, 4))
def pointwise_conv_relu6(x_2d, w, b, tile_m, max_weight_bytes):
    return _pointwise_relu6_impl(x_2d, w, b, tile_m, max_weight_bytes)


def _pcr_fwd(x_2d, w, b, tile_m, max_weight_bytes):
    y = _pointwise_relu6_impl(x_2d, w, b, tile_m, max_weight_bytes)
    return y, (x_2d, w, y)


def _pcr_bwd(tile_m, max_weight_bytes, res, g):
    # TODO(synk): backward is plain XLA (mem-bound, same shapes as forward);
    # a Pallas backward kernel would reuse the forward's tiling.
    x_2d, w, y = res
    gate = ((y > 0) & (y < 6)).astype(jnp.float32)
    g_eff = g.astype(jnp.float32) * gate
    w_f32 = w.astype(jnp.float32)
    dx = (g_eff @ w_f32.T).astype(x_2d.dtype)
    dw = (x_2d.astype(jnp.float32).T @ g_eff).astype(w.dtype)
    db = jnp.sum(g_eff, axis=0, keepdims=True).astype(jnp.float32)
    return dx, dw, db


pointwise_conv_relu6.defvjp(_pcr_fwd, _pcr_bwd)


# ----------------------------- modules ---------------------------------------


class CheckpointModule:
    """JAX mirror of mobilenet_base.CheckpointModule.

    forward(x) == checkpoint(self._forward, x) when use_checkpoint; this does
    not change forward-pass values — jax.checkpoint reproduces the
    rematerialize-in-backward behavior.
    """

    def __init__(self, use_checkpoint=True):
        self._use_checkpoint = use_checkpoint

    def forward(self, *args, **kwargs):
        if self._use_checkpoint:
            return jax.checkpoint(self._forward)(*args, **kwargs)
        return self._forward(*args, **kwargs)

    def __call__(self, *args, **kwargs):
        return self.forward(*args, **kwargs)

    def _forward(self, *args, **kwargs):
        raise NotImplementedError


class PointwiseConvReLU6(CheckpointModule):
    """Concrete _forward: 1x1 conv + bias + ReLU6, NHWC, Pallas hot path."""

    def __init__(self, in_channels, out_channels, use_checkpoint=True,
                 tile_m=1024, act_dtype=jnp.bfloat16,
                 max_weight_bytes=8 * 1024 * 1024):
        super().__init__(use_checkpoint=use_checkpoint)
        self.in_channels = in_channels
        self.out_channels = out_channels
        self._tile_m = int(tile_m)
        self._act_dtype = act_dtype
        self._max_weight_bytes = int(max_weight_bytes)

        # Deterministic synthetic parameters (no checkpoint load).
        kw, kb = jax.random.split(jax.random.PRNGKey(42))
        scale = 1.0 / jnp.sqrt(jnp.float32(in_channels))
        self.weight = (jax.random.normal(kw, (in_channels, out_channels),
                                         dtype=jnp.float32) * scale)
        self.bias = (jax.random.normal(kb, (out_channels,),
                                       dtype=jnp.float32) * 0.1)

        # Kernel-side parameters: bf16 weights (halved weight stream), f32 bias.
        self._w_bf16 = self.weight.astype(jnp.bfloat16)
        self._b = self.bias.reshape(1, out_channels).astype(jnp.float32)

    def _forward(self, x):
        # x: NHWC (channels-last end-to-end; no wrapper transposes).
        n, h, w_sp, c = x.shape
        assert c == self.in_channels
        if x.dtype != self._act_dtype:
            # In a full network the upstream layer already produces bf16; this
            # cast is a no-op on the intended end-to-end bf16 path.
            x = x.astype(self._act_dtype)
        x_2d = x.reshape(n * h * w_sp, c)
        y_2d = pointwise_conv_relu6(x_2d, self._w_bf16, self._b,
                                    self._tile_m, self._max_weight_bytes)
        return y_2d.reshape(n, h, w_sp, self.out_channels)


# ------------------------------ demo ------------------------------------------


if __name__ == "__main__":
    key = jax.random.PRNGKey(0)
    k_x, k_wide = jax.random.split(key)

    N, H, W, C, COUT = 2, 16, 16, 4, 8
    # End-to-end bf16 activation path (as in a real bf16 network).
    x = jax.random.normal(k_x, (N, H, W, C), dtype=jnp.float32).astype(jnp.bfloat16)

    mod_ckpt = PointwiseConvReLU6(C, COUT, use_checkpoint=True)
    mod_plain = PointwiseConvReLU6(C, COUT, use_checkpoint=False)

    y_ckpt = jax.block_until_ready(jax.jit(mod_ckpt)(x))
    y_plain = jax.block_until_ready(jax.jit(mod_plain)(x))

    assert y_ckpt.shape == (N, H, W, COUT)
    assert y_ckpt.dtype == jnp.bfloat16
    # checkpoint wrapper must not change forward-pass values
    assert jnp.allclose(y_ckpt.astype(jnp.float32), y_plain.astype(jnp.float32),
                        atol=1e-6, rtol=1e-6)

    # Reference: same bf16-rounded operands, f32 math, bf16 output tolerance.
    xf = x.astype(jnp.float32)
    wf = mod_ckpt._w_bf16.astype(jnp.float32)
    ref = jnp.clip(
        jnp.einsum("nhwc,co->nhwo", xf, wf,
                   precision=jax.lax.Precision.HIGHEST)
        + mod_ckpt.bias.reshape(1, 1, 1, COUT),
        0.0, 6.0)
    assert jnp.allclose(y_ckpt.astype(jnp.float32), ref, atol=5e-2, rtol=5e-2)

    # Gradient through jax.checkpoint + custom VJP (the reason the module exists).
    loss = lambda xx: jnp.sum(mod_ckpt(xx).astype(jnp.float32))
    gx = jax.block_until_ready(jax.jit(jax.grad(loss))(x))
    assert gx.shape == x.shape
    assert bool(jnp.isfinite(gx.astype(jnp.float32)).all())

    # Exercise the K-tiled accumulator fallback (force tiling with a tiny
    # weight-residency threshold): Cin=256 -> tk=128, num_k=2.
    mod_wide = PointwiseConvReLU6(256, 128, use_checkpoint=False,
                                  max_weight_bytes=32 * 1024)
    xw = jax.random.normal(k_wide, (1, 8, 8, 256),
                           dtype=jnp.float32).astype(jnp.bfloat16)
    yw = jax.block_until_ready(jax.jit(mod_wide)(xw))
    refw = jnp.clip(
        jnp.einsum("nhwc,co->nhwo", xw.astype(jnp.float32),
                   mod_wide._w_bf16.astype(jnp.float32),
                   precision=jax.lax.Precision.HIGHEST)
        + mod_wide.bias.reshape(1, 1, 1, 128),
        0.0, 6.0)
    assert jnp.allclose(yw.astype(jnp.float32), refw, atol=5e-2, rtol=5e-2)

    print("KERNEL_OK")
</pallas_src>

<mosaic_0001>
module attributes {stable_mosaic.version = 11 : i64} {
  func.func @_pw_relu6_fused_kernel(%arg0: i32, %arg1: memref<256x4xbf16, #tpu.memory_space<vmem>>, %arg2: memref<4x8xbf16, #tpu.memory_space<vmem>>, %arg3: memref<1x8xf32, #tpu.memory_space<vmem>>, %arg4: memref<256x8xbf16, #tpu.memory_space<vmem>>) attributes {dimension_semantics = [#tpu.dimension_semantics<parallel>], iteration_bounds = array<i64: 2>, scalar_prefetch = 0 : i64, scratch_operands = 0 : i64, tpu.core_type = #tpu.core_type<tc>, window_params = [{transform_indices = @transform_0, window_bounds = array<i64: 256, 4>}, {pipeline_mode = #tpu.pipeline_mode<synchronous>, transform_indices = @transform_1, window_bounds = array<i64: 4, 8>}, {pipeline_mode = #tpu.pipeline_mode<synchronous>, transform_indices = @transform_2, window_bounds = array<i64: 1, 8>}, {transform_indices = @transform_3, window_bounds = array<i64: 256, 8>}]} {
    %c0 = arith.constant 0 : index
    %c0_0 = arith.constant 0 : index
    %0 = vector.load %arg1[%c0, %c0_0] : memref<256x4xbf16, #tpu.memory_space<vmem>>, vector<256x4xbf16>
    %c0_1 = arith.constant 0 : index
    %c0_2 = arith.constant 0 : index
    %1 = vector.load %arg2[%c0_1, %c0_2] : memref<4x8xbf16, #tpu.memory_space<vmem>>, vector<4x8xbf16>
    %cst = arith.constant dense<0.000000e+00> : vector<256x8xf32>
    %2 = tpu.matmul %0, %1, %cst {dimension_numbers = #tpu.dot_dimension_numbers<[1], [0], [0], [1], [0, 0, 1, 1], [], []>} : vector<256x4xbf16>, vector<4x8xbf16>, vector<256x8xf32> -> vector<256x8xf32>
    %c0_3 = arith.constant 0 : index
    %c0_4 = arith.constant 0 : index
    %3 = vector.load %arg3[%c0_3, %c0_4] : memref<1x8xf32, #tpu.memory_space<vmem>>, vector<1x8xf32>
    %4 = vector.broadcast %3 : vector<1x8xf32> to vector<256x8xf32>
    %5 = arith.addf %2, %4 : vector<256x8xf32>
    %cst_5 = arith.constant 0.000000e+00 : f32
    %cst_6 = arith.constant 6.000000e+00 : f32
    %6 = vector.broadcast %cst_5 : f32 to vector<256x8xf32>
    %7 = arith.maximumf %6, %5 : vector<256x8xf32>
    %8 = vector.broadcast %cst_6 : f32 to vector<256x8xf32>
    %9 = arith.minimumf %8, %7 : vector<256x8xf32>
    %10 = arith.truncf %9 : vector<256x8xf32> to vector<256x8xbf16>
    %c0_7 = arith.constant 0 : index
    %c0_8 = arith.constant 0 : index
    %11 = vector.load %arg4[%c0_7, %c0_8] : memref<256x8xbf16, #tpu.memory_space<vmem>>, vector<256x8xbf16>
    tpu.vector_store %arg4[%c0_7, %c0_8], %10 {strides = array<i32>} : memref<256x8xbf16, #tpu.memory_space<vmem>>, vector<256x8xbf16>,
    return
  }
  func.func @transform_0(%arg0: i32) -> (i32, i32) {
    %c0_i32 = arith.constant 0 : i32
    %c0_i32_0 = arith.constant 0 : i32
    return %arg0, %c0_i32 : i32, i32
  }
  func.func @transform_1(%arg0: i32) -> (i32, i32) {
    %c0_i32 = arith.constant 0 : i32
    %c0_i32_0 = arith.constant 0 : i32
    %c0_i32_1 = arith.constant 0 : i32
    return %c0_i32, %c0_i32_0 : i32, i32
  }
  func.func @transform_2(%arg0: i32) -> (i32, i32) {
    %c0_i32 = arith.constant 0 : i32
    %c0_i32_0 = arith.constant 0 : i32
    %c0_i32_1 = arith.constant 0 : i32
    return %c0_i32, %c0_i32_0 : i32, i32
  }
  func.func @transform_3(%arg0: i32) -> (i32, i32) {
    %c0_i32 = arith.constant 0 : i32
    %c0_i32_0 = arith.constant 0 : i32
    return %arg0, %c0_i32 : i32, i32
  }
}

</mosaic_0001>

<llo_original>
// kernel: checkpoint.1
$region0: #{checkpoint.1}
  #allocation0 [shape = 'u32[]', space=smem, size = 0x4, offset = 0x4, fixed_abs, tag = 'smem constant byte address 0x4 - core index']
  #allocation1 [shape = 'u32[144,128]{1,0:T(1,128)}', space=vmem, size = 0x12000, scoped, tag = 'internal scratch']
  %s0 = inlined_call_operand.vmem [shape: bf16[512,4], index: 0, kind: input, shape index: {}]
  %s1 = inlined_call_operand.vmem [shape: bf16[4,8], index: 1, kind: input, shape index: {}]
  %s2 = inlined_call_operand.vmem [shape: f32[1,8], index: 2, kind: input, shape index: {}]
  %s3 = inlined_call_operand.vmem [shape: bf16[512,8], index: 3, kind: output, shape index: {}]
  %s4 = sld [smem:[#allocation0]]
  $region45: #{checkpoint.1} parent=0
    _
  %s6 = ssub.s32 1, %s4
  %s7 = scalar_select 0, %s6, %s4
  loop: start=0, step=1, limit=4
  $region2: #{checkpoint.1} parent=0 // loop_pre_header
    _
  $region3: #{checkpoint.1} parent=0 // loop_header
    %s9 = sphi 0, %s13
    %p10 = scmp.ge.s32.totalorder %s9, 4
    %s19 = sphi 0, %s21
    %s22 = sphi 0, %s19
    %s23 = sphi 0, %s22
    %s39 = sphi 0, %s23
    %s43 = sphi 0, %s43
    %s45 = sphi 0, %s43
    %s46 = sphi 0, %s45
    %s60 = sphi 0, %s46
    %s64 = sphi 0, %s64
    %s66 = sphi 0, %s64
    %s67 = sphi 0, %s66
    %s81 = sphi 0, %s67
    %s87 = sphi 0, %s89
    %s90 = sphi 0, %s87
    %s91 = sphi 0, %s90
    %s107 = sphi 0, %s91
  $region4: #{checkpoint.1} parent=0 // loop_header_branch
    %12 = sbr.rel (%p10) target = $region8
  $region5: #{checkpoint.1} parent=0 // loop_body
    %s14 = ssub.s32 %s9, 1
    %s15 = ssub.s32 %s9, 2
    %s16 = sadd.s32 %s9, 1
    %s17 = ssub.s32 %s9, %s16
    %p18 = scmp.eq.s32.totalorder %s17, 0
    %s20 = sadd.s32 %s19, 1
    %s21 = scalar_select %p18, %s19, %s20
    %p24 = pneg %p18
    %p25 = scmp.eq.s32.totalorder %s9, 1
    %p26 = por %p24, %p25
    %p27 = scmp.ne.s32.totalorder %s19, %s22
    %p28 = scmp.eq.s32.totalorder %s9, 0
    %p29 = por %p27, %p28
    %p30 = scmp.ne.s32.totalorder %s19, %s22
    %p31 = scmp.eq.s32.totalorder %s14, 1
    %p32 = por %p30, %p31
    %p33 = scmp.ne.s32.totalorder %s22, %s23
    %p34 = scmp.eq.s32.totalorder %s14, 0
    %p35 = por %p33, %p34
    %p36 = scmp.ne.s32.totalorder %s22, %s23
    %p37 = scmp.eq.s32.totalorder %s15, 1
    %p38 = por %p36, %p37
    %p40 = scmp.ne.s32.totalorder %s23, %s39
    %p41 = scmp.eq.s32.totalorder %s15, 0
    %p42 = por %p40, %p41
    %s44 = sadd.s32 %s43, 1
    %p47 = scmp.eq.s32.totalorder %s9, 1
    %p48 = scmp.ne.s32.totalorder %s43, %s45
    %p49 = scmp.eq.s32.totalorder %s9, 0
    %p50 = por %p48, %p49
    %p51 = scmp.ne.s32.totalorder %s43, %s45
    %p52 = scmp.eq.s32.totalorder %s14, 1
    %p53 = por %p51, %p52
    %p54 = scmp.ne.s32.totalorder %s45, %s46
    %p55 = scmp.eq.s32.totalorder %s14, 0
    %p56 = por %p54, %p55
    %p57 = scmp.ne.s32.totalorder %s45, %s46
    %p58 = scmp.eq.s32.totalorder %s15, 1
    %p59 = por %p57, %p58
    %p61 = scmp.ne.s32.totalorder %s46, %s60
    %p62 = scmp.eq.s32.totalorder %s15, 0
    %p63 = por %p61, %p62
    %s65 = sadd.s32 %s64, 1
    %p68 = scmp.eq.s32.totalorder %s9, 1
    %p69 = scmp.ne.s32.totalorder %s64, %s66
    %p70 = scmp.eq.s32.totalorder %s9, 0
    %p71 = por %p69, %p70
    %p72 = scmp.ne.s32.totalorder %s64, %s66
    %p73 = scmp.eq.s32.totalorder %s14, 1
    %p74 = por %p72, %p73
    %p75 = scmp.ne.s32.totalorder %s66, %s67
    %p76 = scmp.eq.s32.totalorder %s14, 0
    %p77 = por %p75, %p76
    %p78 = scmp.ne.s32.totalorder %s66, %s67
    %p79 = scmp.eq.s32.totalorder %s15, 1
    %p80 = por %p78, %p79
    %p82 = scmp.ne.s32.totalorder %s67, %s81
    %p83 = scmp.eq.s32.totalorder %s15, 0
    %p84 = por %p82, %p83
    %s85 = ssub.s32 %s9, %s16
    %p86 = scmp.eq.s32.totalorder %s85, 0
    %s88 = sadd.s32 %s87, 1
    %s89 = scalar_select %p86, %s87, %s88
    %p92 = pneg %p86
    %p93 = scmp.eq.s32.totalorder %s9, 1
    %p94 = por %p92, %p93
    %p95 = scmp.ne.s32.totalorder %s87, %s90
    %p96 = scmp.eq.s32.totalorder %s9, 0
    %p97 = por %p95, %p96
    %p98 = scmp.ne.s32.totalorder %s87, %s90
    %p99 = scmp.eq.s32.totalorder %s14, 1
    %p100 = por %p98, %p99
    %p101 = scmp.ne.s32.totalorder %s90, %s91
    %p102 = scmp.eq.s32.totalorder %s14, 0
    %p103 = por %p101, %p102
    %p104 = scmp.ne.s32.totalorder %s90, %s91
    %p105 = scmp.eq.s32.totalorder %s15, 1
    %p106 = por %p104, %p105
    %p108 = scmp.ne.s32.totalorder %s91, %s107
    %p109 = scmp.eq.s32.totalorder %s15, 0
    %p110 = por %p108, %p109
    %p111 = scmp.le.s32.totalorder 1, %s9
    %p112 = scmp.lt.s32.totalorder %s9, 3
    %p113 = pnand %p111, %p112
    %p114 = pneg %p113
    // Predicated region
    $region9: #{checkpoint.1} parent=5 // pred_check
      _
    $region10: #{checkpoint.1} parent=5 // pred_check_branch
      %116 = sbr.rel (%p113) target = $region12
    $region11: #{checkpoint.1} parent=5 // pred_region
      %s117 = ssub.s32 %s9, 1
      // Predicated region
      $region13: #{checkpoint.1} parent=11 // pred_check
        %p118 = pneg %p56
      $region14: #{checkpoint.1} parent=11 // pred_check_branch
        %120 = sbr.rel (%p118) target = $region16
      $region15: #{checkpoint.1} parent=11 // pred_region
        _
      $region16: #{checkpoint.1} parent=11 // pred_fallthru
        _
      // Predicated region
      $region17: #{checkpoint.1} parent=11 // pred_check
        %p121 = pneg %p77
      $region18: #{checkpoint.1} parent=11 // pred_check_branch
        %123 = sbr.rel (%p121) target = $region20
      $region19: #{checkpoint.1} parent=11 // pred_region
        _
      $region20: #{checkpoint.1} parent=11 // pred_fallthru
        _
    $region12: #{checkpoint.1} parent=5 // pred_fallthru
      _
    %p124 = scmp.lt.s32.totalorder %s9, 2
    // Predicated region
    $region21: #{checkpoint.1} parent=5 // pred_check
      %p125 = pneg %p124
    $region22: #{checkpoint.1} parent=5 // pred_check_branch
      %127 = sbr.rel (%p125) target = $region24
    $region23: #{checkpoint.1} parent=5 // pred_region
      // Predicated region
      $region25: #{checkpoint.1} parent=23 // pred_check
        %p128 = pneg %p29
      $region26: #{checkpoint.1} parent=23 // pred_check_branch
        %130 = sbr.rel (%p128) target = $region28
      $region27: #{checkpoint.1} parent=23 // pred_region
        %s131 = smul.u32 32, %s9
        %p132 = scmp.lt.s32.totalorder %s131, 63
        %s133 = scalar_select %p132, %s131, 63
        %s134 = smul.addr %s133, 4
        %s135 = scalar_lea.vmem %s0, %s134
        %s136 = smul.u32 32, %s9
      $region28: #{checkpoint.1} parent=23 // pred_fallthru
        _
    $region24: #{checkpoint.1} parent=5 // pred_fallthru
      _
    %p137 = scmp.le.s32.totalorder 1, %s9
    %p138 = scmp.lt.s32.totalorder %s9, 3
    %p139 = pnand %p137, %p138
    %p140 = pneg %p139
    // Predicated region
    $region29: #{checkpoint.1} parent=5 // pred_check
      _
    $region30: #{checkpoint.1} parent=5 // pred_check_branch
      %142 = sbr.rel (%p139) target = $region32
    $region31: #{checkpoint.1} parent=5 // pred_region
      %s143 = ssub.s32 %s9, 1
      %s144 = smul.u32 32, %s14
      %p145 = scmp.lt.s32.totalorder %s144, 63
      %s146 = scalar_select %p145, %s144, 63
      %s147 = smul.addr %s146, 4
      %s148 = scalar_lea.vmem %s0, %s147
      %p149 = pneg %p35
      %p150 = pneg %p32
      %p151 = pneg %p56
      %p152 = pneg %p53
      %p153 = pneg %p77
      %p154 = pneg %p74
      %p155 = pneg %p103
      %p156 = pneg %p100
      %s157 = smul.u32 32, %s14
      %p158 = scmp.lt.s32.totalorder %s157, 63
      %s159 = scalar_select %p158, %s157, 63
      %s160 = smul.addr %s159, 4
      %s161 = scalar_lea.vmem %s3, %s160
      %s162 = smul.u32 32, %s14
      %p163 = scmp.lt.s32.totalorder %s162, 63
      %s164 = scalar_select %p163, %s162, 63
      %s165 = smul.addr %s164, 4
      %s166 = scalar_lea.vmem %s0, %s165
      %s167 = smul.u32 32, %s14
      %s168 = smul.u32 32, %s14
      %p169 = scmp.lt.s32.totalorder %s168, 63
      %s170 = scalar_select %p169, %s168, 63
      %s171 = smul.addr %s170, 4
      %s172 = scalar_lea.vmem %s3, %s171
      %s173 = smul.u32 32, %s14
      %v175 = vld [vmem:[%s166] sm:$0xf]
      %v176 = vld [vmem:[%s166 + $0x4] sm:$0xf]
      %v177 = vld [vmem:[%s166 + $0x8] sm:$0xf]
      %v178 = vld [vmem:[%s166 + $0xc] sm:$0xf]
      %v179 = vld [vmem:[%s166 + $0x10] sm:$0xf]
      %v180 = vld [vmem:[%s166 + $0x14] sm:$0xf]
      %v181 = vld [vmem:[%s166 + $0x18] sm:$0xf]
      %v182 = vld [vmem:[%s166 + $0x1c] sm:$0xf]
      %v183 = vld [vmem:[%s166 + $0x20] sm:$0xf]
      %v184 = vld [vmem:[%s166 + $0x24] sm:$0xf]
      %v185 = vld [vmem:[%s166 + $0x28] sm:$0xf]
      %v186 = vld [vmem:[%s166 + $0x2c] sm:$0xf]
      %v187 = vld [vmem:[%s166 + $0x30] sm:$0xf]
      %v188 = vld [vmem:[%s166 + $0x34] sm:$0xf]
      %v189 = vld [vmem:[%s166 + $0x38] sm:$0xf]
      %v190 = vld [vmem:[%s166 + $0x3c] sm:$0xf]
      %v191 = vld [vmem:[%s166 + $0x40] sm:$0xf]
      %v192 = vld [vmem:[%s166 + $0x44] sm:$0xf]
      %v193 = vld [vmem:[%s166 + $0x48] sm:$0xf]
      %v194 = vld [vmem:[%s166 + $0x4c] sm:$0xf]
      %v195 = vld [vmem:[%s166 + $0x50] sm:$0xf]
      %v196 = vld [vmem:[%s166 + $0x54] sm:$0xf]
      %v197 = vld [vmem:[%s166 + $0x58] sm:$0xf]
      %v198 = vld [vmem:[%s166 + $0x5c] sm:$0xf]
      %v199 = vld [vmem:[%s166 + $0x60] sm:$0xf]
      %v200 = vld [vmem:[%s166 + $0x64] sm:$0xf]
      %v201 = vld [vmem:[%s166 + $0x68] sm:$0xf]
      %v202 = vld [vmem:[%s166 + $0x6c] sm:$0xf]
      %v203 = vld [vmem:[%s166 + $0x70] sm:$0xf]
      %v204 = vld [vmem:[%s166 + $0x74] sm:$0xf]
      %v205 = vld [vmem:[%s166 + $0x78] sm:$0xf]
      %v206 = vld [vmem:[%s166 + $0x7c] sm:$0xf]
      %v207 = vld [vmem:[%s1] sm:$0x3]
      %v208 = vld [vmem:[%s2] sm:$0x1]
      %v210 = vlaneseq
      %v211 = vshrl.u32 %v210, 7
      %v212 = vsub.s32 0, %v211
      %v213 = vrot.slane %v208, %v212
      %v247 = vunpack.c.l.b16 %v175
      %v248 = vunpack.c.l.b16 %v176
      %v249 = vunpack.c.l.b16 %v177
      %v250 = vunpack.c.l.b16 %v178
      %v251 = vunpack.c.l.b16 %v179
      %v252 = vunpack.c.l.b16 %v180
      %v253 = vunpack.c.l.b16 %v181
      %v254 = vunpack.c.l.b16 %v182
      %v255 = vunpack.c.l.b16 %v183
      %v256 = vunpack.c.l.b16 %v184
      %v257 = vunpack.c.l.b16 %v185
      %v258 = vunpack.c.l.b16 %v186
      %v259 = vunpack.c.l.b16 %v187
      %v260 = vunpack.c.l.b16 %v188
      %v261 = vunpack.c.l.b16 %v189
      %v262 = vunpack.c.l.b16 %v190
      %v263 = vunpack.c.l.b16 %v191
      %v264 = vunpack.c.l.b16 %v192
      %v265 = vunpack.c.l.b16 %v193
      %v266 = vunpack.c.l.b16 %v194
      %v267 = vunpack.c.l.b16 %v195
      %v268 = vunpack.c.l.b16 %v196
      %v269 = vunpack.c.l.b16 %v197
      %v270 = vunpack.c.l.b16 %v198
      %v271 = vunpack.c.l.b16 %v199
      %v272 = vunpack.c.l.b16 %v200
      %v273 = vunpack.c.l.b16 %v201
      %v274 = vunpack.c.l.b16 %v202
      %v275 = vunpack.c.l.b16 %v203
      %v276 = vunpack.c.l.b16 %v204
      %v277 = vunpack.c.l.b16 %v205
      %v278 = vunpack.c.l.b16 %v206
      %v279 = vpack.c.b16 %v248, %v247
      %v280 = vpack.c.b16 %v250, %v249
      %v281 = vpack.c.b16 %v252, %v251
      %v282 = vpack.c.b16 %v254, %v253
      %v283 = vpack.c.b16 %v256, %v255
      %v284 = vpack.c.b16 %v258, %v257
      %v285 = vpack.c.b16 %v260, %v259
      %v286 = vpack.c.b16 %v262, %v261
      %v287 = vpack.c.b16 %v264, %v263
      %v288 = vpack.c.b16 %v266, %v265
      %v289 = vpack.c.b16 %v268, %v267
      %v290 = vpack.c.b16 %v270, %v269
      %v291 = vpack.c.b16 %v272, %v271
      %v292 = vpack.c.b16 %v274, %v273
      %v293 = vpack.c.b16 %v276, %v275
      %v294 = vpack.c.b16 %v278, %v277
      %vm295 = vcmask 31744
      %v297 = vsel %vm295, %v279, 0
      %v300 = vsel %vm295, %v280, 0
      %v303 = vsel %vm295, %v281, 0
      %v306 = vsel %vm295, %v282, 0
      %v309 = vsel %vm295, %v283, 0
      %v312 = vsel %vm295, %v284, 0
      %v315 = vsel %vm295, %v285, 0
      %v318 = vsel %vm295, %v286, 0
      %v321 = vsel %vm295, %v287, 0
      %v324 = vsel %vm295, %v288, 0
      %v327 = vsel %vm295, %v289, 0
      %v330 = vsel %vm295, %v290, 0
      %v333 = vsel %vm295, %v291, 0
      %v336 = vsel %vm295, %v292, 0
      %v339 = vsel %vm295, %v293, 0
      %v342 = vsel %vm295, %v294, 0
      %vm344 = vcmask 1041408
      %v346 = vsel %vm344, %v207, 0
      %348 = vmatprep.subr.bf16.mxu0 0
      %349 = vmatpush1.bf16.msra.mxu0 0
      %350 = vmatprep.subr.bf16.mxu0 0
      %351 = vmatpush1.bf16.msra.mxu0 0
      %352 = vmatprep.subr.bf16.mxu0 0
      %353 = vmatpush1.bf16.msra.mxu0 0
      %354 = vmatprep.subr.bf16.mxu0 0
      %355 = vmatpush1.bf16.msra.mxu0 0
      %356 = vmatprep.subr.bf16.mxu0 0
      %357 = vmatpush1.bf16.msra.mxu0 0
      %358 = vmatprep.subr.bf16.mxu0 0
      %359 = vmatpush1.bf16.msra.mxu0 0
      %360 = vmatprep.subr.bf16.mxu0 0
      %361 = vmatpush1.bf16.msra.mxu0 0
      %362 = vmatprep.subr.bf16.mxu0 0
      %363 = vmatpush1.bf16.msra.mxu0 %v346
      %364 = vmatprep.subr.bf16.mxu0 0
      %365 = vmatpush2.bf16.msra.mxu0 0
      %366 = vmatprep.subr.bf16.mxu0 0
      %367 = vmatpush2.bf16.msra.mxu0 0
      %368 = vmatprep.subr.bf16.mxu0 0
      %369 = vmatpush2.bf16.msra.mxu0 0
      %370 = vmatprep.subr.bf16.mxu0 0
      %371 = vmatpush2.bf16.msra.mxu0 0
      %372 = vmatprep.subr.bf16.mxu0 0
      %373 = vmatpush2.bf16.msra.mxu0 0
      %374 = vmatprep.subr.bf16.mxu0 0
      %375 = vmatpush2.bf16.msra.mxu0 0
      %376 = vmatprep.subr.bf16.mxu0 0
      %377 = vmatpush2.bf16.msra.mxu0 0
      %378 = vmatprep.subr.bf16.mxu0 0
      %379 = vmatpush2.bf16.msra.mxu0 0
      %380 = vmatprep.mubr.bf16.mxu0 0
      %381 = vmatmul.mubr.bf16.gmra.mxu0 %v297
      %v382 = vpop.f32.mrf.mxu0
      %v383 = vadd.f32 %v213, %v382
      %v384 = vpop.f32.mrf.mxu0
      %v385 = vpop.f32.mrf.mxu0
      %v386 = vadd.f32 %v213, %v385
      %v387 = vpop.f32.mrf.mxu0
      %388 = vmatprep.mubr.bf16.mxu0 0
      %389 = vmatmul.mubr.bf16.gmra.mxu0 %v300
      %v390 = vpop.f32.mrf.mxu0
      %v391 = vadd.f32 %v213, %v390
      %v392 = vpop.f32.mrf.mxu0
      %v393 = vpop.f32.mrf.mxu0
      %v394 = vadd.f32 %v213, %v393
      %v395 = vpop.f32.mrf.mxu0
      %396 = vmatprep.mubr.bf16.mxu0 0
      %397 = vmatmul.mubr.bf16.gmra.mxu0 %v303
      %v398 = vpop.f32.mrf.mxu0
      %v399 = vadd.f32 %v213, %v398
      %v400 = vpop.f32.mrf.mxu0
      %v401 = vpop.f32.mrf.mxu0
      %v402 = vadd.f32 %v213, %v401
      %v403 = vpop.f32.mrf.mxu0
      %404 = vmatprep.mubr.bf16.mxu0 0
      %405 = vmatmul.mubr.bf16.gmra.mxu0 %v306
      %v406 = vpop.f32.mrf.mxu0
      %v407 = vadd.f32 %v213, %v406
      %v408 = vpop.f32.mrf.mxu0
      %v409 = vpop.f32.mrf.mxu0
      %v410 = vadd.f32 %v213, %v409
      %v411 = vpop.f32.mrf.mxu0
      %412 = vmatprep.mubr.bf16.mxu0 0
      %413 = vmatmul.mubr.bf16.gmra.mxu0 %v309
      %v414 = vpop.f32.mrf.mxu0
      %v415 = vadd.f32 %v213, %v414
      %v416 = vpop.f32.mrf.mxu0
      %v417 = vpop.f32.mrf.mxu0
      %v418 = vadd.f32 %v213, %v417
      %v419 = vpop.f32.mrf.mxu0
      %420 = vmatprep.mubr.bf16.mxu0 0
      %421 = vmatmul.mubr.bf16.gmra.mxu0 %v312
      %v422 = vpop.f32.mrf.mxu0
      %v423 = vadd.f32 %v213, %v422
      %v424 = vpop.f32.mrf.mxu0
      %v425 = vpop.f32.mrf.mxu0
      %v426 = vadd.f32 %v213, %v425
      %v427 = vpop.f32.mrf.mxu0
      %428 = vmatprep.mubr.bf16.mxu0 0
      %429 = vmatmul.mubr.bf16.gmra.mxu0 %v315
      %v430 = vpop.f32.mrf.mxu0
      %v431 = vadd.f32 %v213, %v430
      %v432 = vpop.f32.mrf.mxu0
      %v433 = vpop.f32.mrf.mxu0
      %v434 = vadd.f32 %v213, %v433
      %v435 = vpop.f32.mrf.mxu0
      %436 = vmatprep.mubr.bf16.mxu0 0
      %437 = vmatmul.mubr.bf16.gmra.mxu0 %v318
      %v438 = vpop.f32.mrf.mxu0
      %v439 = vadd.f32 %v213, %v438
      %v440 = vpop.f32.mrf.mxu0
      %v441 = vpop.f32.mrf.mxu0
      %v442 = vadd.f32 %v213, %v441
      %v443 = vpop.f32.mrf.mxu0
      %444 = vmatprep.mubr.bf16.mxu0 0
      %445 = vmatmul.mubr.bf16.gmra.mxu0 %v321
      %v446 = vpop.f32.mrf.mxu0
      %v447 = vadd.f32 %v213, %v446
      %v448 = vpop.f32.mrf.mxu0
      %v449 = vpop.f32.mrf.mxu0
      %v450 = vadd.f32 %v213, %v449
      %v451 = vpop.f32.mrf.mxu0
      %452 = vmatprep.mubr.bf16.mxu0 0
      %453 = vmatmul.mubr.bf16.gmra.mxu0 %v324
      %v454 = vpop.f32.mrf.mxu0
      %v455 = vadd.f32 %v213, %v454
      %v456 = vpop.f32.mrf.mxu0
      %v457 = vpop.f32.mrf.mxu0
      %v458 = vadd.f32 %v213, %v457
      %v459 = vpop.f32.mrf.mxu0
      %460 = vmatprep.mubr.bf16.mxu0 0
      %461 = vmatmul.mubr.bf16.gmra.mxu0 %v327
      %v462 = vpop.f32.mrf.mxu0
      %v463 = vadd.f32 %v213, %v462
      %v464 = vpop.f32.mrf.mxu0
      %v465 = vpop.f32.mrf.mxu0
      %v466 = vadd.f32 %v213, %v465
      %v467 = vpop.f32.mrf.mxu0
      %468 = vmatprep.mubr.bf16.mxu0 0
      %469 = vmatmul.mubr.bf16.gmra.mxu0 %v330
      %v470 = vpop.f32.mrf.mxu0
      %v471 = vadd.f32 %v213, %v470
      %v472 = vpop.f32.mrf.mxu0
      %v473 = vpop.f32.mrf.mxu0
      %v474 = vadd.f32 %v213, %v473
      %v475 = vpop.f32.mrf.mxu0
      %476 = vmatprep.mubr.bf16.mxu0 0
      %477 = vmatmul.mubr.bf16.gmra.mxu0 %v333
      %v478 = vpop.f32.mrf.mxu0
      %v479 = vadd.f32 %v213, %v478
      %v480 = vpop.f32.mrf.mxu0
      %v481 = vpop.f32.mrf.mxu0
      %v482 = vadd.f32 %v213, %v481
      %v483 = vpop.f32.mrf.mxu0
      %484 = vmatprep.mubr.bf16.mxu0 0
      %485 = vmatmul.mubr.bf16.gmra.mxu0 %v336
      %v486 = vpop.f32.mrf.mxu0
      %v487 = vadd.f32 %v213, %v486
      %v488 = vpop.f32.mrf.mxu0
      %v489 = vpop.f32.mrf.mxu0
      %v490 = vadd.f32 %v213, %v489
      %v491 = vpop.f32.mrf.mxu0
      %492 = vmatprep.mubr.bf16.mxu0 0
      %493 = vmatmul.mubr.bf16.gmra.mxu0 %v339
      %v494 = vpop.f32.mrf.mxu0
      %v495 = vadd.f32 %v213, %v494
      %v496 = vpop.f32.mrf.mxu0
      %v497 = vpop.f32.mrf.mxu0
      %v498 = vadd.f32 %v213, %v497
      %v499 = vpop.f32.mrf.mxu0
      %500 = vmatprep.mubr.bf16.mxu0 0
      %501 = vmatmul.mubr.bf16.gmra.mxu0 %v342
      %v502 = vpop.f32.mrf.mxu0
      %v503 = vadd.f32 %v213, %v502
      %v504 = vpop.f32.mrf.mxu0
      %v505 = vpop.f32.mrf.mxu0
      %v506 = vadd.f32 %v213, %v505
      %v507 = vpop.f32.mrf.mxu0
      %508 = vdwg.mxu0
      %v509 = vmax.f32 %v383, 0.0
      %v510 = vmax.f32 %v386, 0.0
      %v511 = vmax.f32 %v391, 0.0
      %v512 = vmax.f32 %v394, 0.0
      %v513 = vmax.f32 %v399, 0.0
      %v514 = vmax.f32 %v402, 0.0
      %v515 = vmax.f32 %v407, 0.0
      %v516 = vmax.f32 %v410, 0.0
      %v517 = vmax.f32 %v415, 0.0
      %v518 = vmax.f32 %v418, 0.0
      %v519 = vmax.f32 %v423, 0.0
      %v520 = vmax.f32 %v426, 0.0
      %v521 = vmax.f32 %v431, 0.0
      %v522 = vmax.f32 %v434, 0.0
      %v523 = vmax.f32 %v439, 0.0
      %v524 = vmax.f32 %v442, 0.0
      %v525 = vmax.f32 %v447, 0.0
      %v526 = vmax.f32 %v450, 0.0
      %v527 = vmax.f32 %v455, 0.0
      %v528 = vmax.f32 %v458, 0.0
      %v529 = vmax.f32 %v463, 0.0
      %v530 = vmax.f32 %v466, 0.0
      %v531 = vmax.f32 %v471, 0.0
      %v532 = vmax.f32 %v474, 0.0
      %v533 = vmax.f32 %v479, 0.0
      %v534 = vmax.f32 %v482, 0.0
      %v535 = vmax.f32 %v487, 0.0
      %v536 = vmax.f32 %v490, 0.0
      %v537 = vmax.f32 %v495, 0.0
      %v538 = vmax.f32 %v498, 0.0
      %v539 = vmax.f32 %v503, 0.0
      %v540 = vmax.f32 %v506, 0.0
      %v541 = vmin.f32 %v509, 6.0
      %v542 = vmin.f32 %v510, 6.0
      %v543 = vmin.f32 %v511, 6.0
      %v544 = vmin.f32 %v512, 6.0
      %v545 = vmin.f32 %v513, 6.0
      %v546 = vmin.f32 %v514, 6.0
      %v547 = vmin.f32 %v515, 6.0
      %v548 = vmin.f32 %v516, 6.0
      %v549 = vmin.f32 %v517, 6.0
      %v550 = vmin.f32 %v518, 6.0
      %v551 = vmin.f32 %v519, 6.0
      %v552 = vmin.f32 %v520, 6.0
      %v553 = vmin.f32 %v521, 6.0
      %v554 = vmin.f32 %v522, 6.0
      %v555 = vmin.f32 %v523, 6.0
      %v556 = vmin.f32 %v524, 6.0
      %v557 = vmin.f32 %v525, 6.0
      %v558 = vmin.f32 %v526, 6.0
      %v559 = vmin.f32 %v527, 6.0
      %v560 = vmin.f32 %v528, 6.0
      %v561 = vmin.f32 %v529, 6.0
      %v562 = vmin.f32 %v530, 6.0
      %v563 = vmin.f32 %v531, 6.0
      %v564 = vmin.f32 %v532, 6.0
      %v565 = vmin.f32 %v533, 6.0
      %v566 = vmin.f32 %v534, 6.0
      %v567 = vmin.f32 %v535, 6.0
      %v568 = vmin.f32 %v536, 6.0
      %v569 = vmin.f32 %v537, 6.0
      %v570 = vmin.f32 %v538, 6.0
      %v571 = vmin.f32 %v539, 6.0
      %v572 = vmin.f32 %v540, 6.0
      %v573 = vpack.c.bf16 %v542, %v541
      %v574 = vpack.c.bf16 %v544, %v543
      %v575 = vpack.c.bf16 %v546, %v545
      %v576 = vpack.c.bf16 %v548, %v547
      %v577 = vpack.c.bf16 %v550, %v549
      %v578 = vpack.c.bf16 %v552, %v551
      %v579 = vpack.c.bf16 %v554, %v553
      %v580 = vpack.c.bf16 %v556, %v555
      %v581 = vpack.c.bf16 %v558, %v557
      %v582 = vpack.c.bf16 %v560, %v559
      %v583 = vpack.c.bf16 %v562, %v561
      %v584 = vpack.c.bf16 %v564, %v563
      %v585 = vpack.c.bf16 %v566, %v565
      %v586 = vpack.c.bf16 %v568, %v567
      %v587 = vpack.c.bf16 %v570, %v569
      %v588 = vpack.c.bf16 %v572, %v571
      %v605 = vunpack.c.l.b16 %v573
      %v606 = vunpack.c.h.b16 %v573
      %v607 = vunpack.c.l.b16 %v574
      %v608 = vunpack.c.h.b16 %v574
      %v609 = vunpack.c.l.b16 %v575
      %v610 = vunpack.c.h.b16 %v575
      %v611 = vunpack.c.l.b16 %v576
      %v612 = vunpack.c.h.b16 %v576
      %v613 = vunpack.c.l.b16 %v577
      %v614 = vunpack.c.h.b16 %v577
      %v615 = vunpack.c.l.b16 %v578
      %v616 = vunpack.c.h.b16 %v578
      %v617 = vunpack.c.l.b16 %v579
      %v618 = vunpack.c.h.b16 %v579
      %v619 = vunpack.c.l.b16 %v580
      %v620 = vunpack.c.h.b16 %v580
      %v621 = vunpack.c.l.b16 %v581
      %v622 = vunpack.c.h.b16 %v581
      %v623 = vunpack.c.l.b16 %v582
      %v624 = vunpack.c.h.b16 %v582
      %v625 = vunpack.c.l.b16 %v583
      %v626 = vunpack.c.h.b16 %v583
      %v627 = vunpack.c.l.b16 %v584
      %v628 = vunpack.c.h.b16 %v584
      %v629 = vunpack.c.l.b16 %v585
      %v630 = vunpack.c.h.b16 %v585
      %v631 = vunpack.c.l.b16 %v586
      %v632 = vunpack.c.h.b16 %v586
      %v633 = vunpack.c.l.b16 %v587
      %v634 = vunpack.c.h.b16 %v587
      %v635 = vunpack.c.l.b16 %v588
      %v636 = vunpack.c.h.b16 %v588
      %v637 = vpack.c.b16 %v605, %v605
      %v638 = vpack.c.b16 %v606, %v606
      %v639 = vpack.c.b16 %v607, %v607
      %v640 = vpack.c.b16 %v608, %v608
      %v641 = vpack.c.b16 %v609, %v609
      %v642 = vpack.c.b16 %v610, %v610
      %v643 = vpack.c.b16 %v611, %v611
      %v644 = vpack.c.b16 %v612, %v612
      %v645 = vpack.c.b16 %v613, %v613
      %v646 = vpack.c.b16 %v614, %v614
      %v647 = vpack.c.b16 %v615, %v615
      %v648 = vpack.c.b16 %v616, %v616
      %v649 = vpack.c.b16 %v617, %v617
      %v650 = vpack.c.b16 %v618, %v618
      %v651 = vpack.c.b16 %v619, %v619
      %v652 = vpack.c.b16 %v620, %v620
      %v653 = vpack.c.b16 %v621, %v621
      %v654 = vpack.c.b16 %v622, %v622
      %v655 = vpack.c.b16 %v623, %v623
      %v656 = vpack.c.b16 %v624, %v624
      %v657 = vpack.c.b16 %v625, %v625
      %v658 = vpack.c.b16 %v626, %v626
      %v659 = vpack.c.b16 %v627, %v627
      %v660 = vpack.c.b16 %v628, %v628
      %v661 = vpack.c.b16 %v629, %v629
      %v662 = vpack.c.b16 %v630, %v630
      %v663 = vpack.c.b16 %v631, %v631
      %v664 = vpack.c.b16 %v632, %v632
      %v665 = vpack.c.b16 %v633, %v633
      %v666 = vpack.c.b16 %v634, %v634
      %v667 = vpack.c.b16 %v635, %v635
      %v668 = vpack.c.b16 %v636, %v636
      %vm701 = vcmask 60416
      %702 = vst.msk [vmem:[%s172] sm:$0xf] %vm701, %v637
      %703 = vst.msk [vmem:[%s172 + $0x4] sm:$0xf] %vm701, %v638
      %704 = vst.msk [vmem:[%s172 + $0x8] sm:$0xf] %vm701, %v639
      %705 = vst.msk [vmem:[%s172 + $0xc] sm:$0xf] %vm701, %v640
      %706 = vst.msk [vmem:[%s172 + $0x10] sm:$0xf] %vm701, %v641
      %707 = vst.msk [vmem:[%s172 + $0x14] sm:$0xf] %vm701, %v642
      %708 = vst.msk [vmem:[%s172 + $0x18] sm:$0xf] %vm701, %v643
      %709 = vst.msk [vmem:[%s172 + $0x1c] sm:$0xf] %vm701, %v644
      %710 = vst.msk [vmem:[%s172 + $0x20] sm:$0xf] %vm701, %v645
      %711 = vst.msk [vmem:[%s172 + $0x24] sm:$0xf] %vm701, %v646
      %712 = vst.msk [vmem:[%s172 + $0x28] sm:$0xf] %vm701, %v647
      %713 = vst.msk [vmem:[%s172 + $0x2c] sm:$0xf] %vm701, %v648
      %714 = vst.msk [vmem:[%s172 + $0x30] sm:$0xf] %vm701, %v649
      %715 = vst.msk [vmem:[%s172 + $0x34] sm:$0xf] %vm701, %v650
      %716 = vst.msk [vmem:[%s172 + $0x38] sm:$0xf] %vm701, %v651
      %717 = vst.msk [vmem:[%s172 + $0x3c] sm:$0xf] %vm701, %v652
      %718 = vst.msk [vmem:[%s172 + $0x40] sm:$0xf] %vm701, %v653
      %719 = vst.msk [vmem:[%s172 + $0x44] sm:$0xf] %vm701, %v654
      %720 = vst.msk [vmem:[%s172 + $0x48] sm:$0xf] %vm701, %v655
      %721 = vst.msk [vmem:[%s172 + $0x4c] sm:$0xf] %vm701, %v656
      %722 = vst.msk [vmem:[%s172 + $0x50] sm:$0xf] %vm701, %v657
      %723 = vst.msk [vmem:[%s172 + $0x54] sm:$0xf] %vm701, %v658
      %724 = vst.msk [vmem:[%s172 + $0x58] sm:$0xf] %vm701, %v659
      %725 = vst.msk [vmem:[%s172 + $0x5c] sm:$0xf] %vm701, %v660
      %726 = vst.msk [vmem:[%s172 + $0x60] sm:$0xf] %vm701, %v661
      %727 = vst.msk [vmem:[%s172 + $0x64] sm:$0xf] %vm701, %v662
      %728 = vst.msk [vmem:[%s172 + $0x68] sm:$0xf] %vm701, %v663
      %729 = vst.msk [vmem:[%s172 + $0x6c] sm:$0xf] %vm701, %v664
      %730 = vst.msk [vmem:[%s172 + $0x70] sm:$0xf] %vm701, %v665
      %731 = vst.msk [vmem:[%s172 + $0x74] sm:$0xf] %vm701, %v666
      %732 = vst.msk [vmem:[%s172 + $0x78] sm:$0xf] %vm701, %v667
      %733 = vst.msk [vmem:[%s172 + $0x7c] sm:$0xf] %vm701, %v668
      %s734 = smul.u32 32, %s14
      %p735 = scmp.lt.s32.totalorder %s734, 63
      %s736 = scalar_select %p735, %s734, 63
      %s737 = smul.addr %s736, 4
      %s738 = scalar_lea.vmem %s3, %s737
      // Predicated region
      $region33: #{checkpoint.1} parent=31 // pred_check
        %p739 = pneg %p100
      $region34: #{checkpoint.1} parent=31 // pred_check_branch
        %741 = sbr.rel (%p739) target = $region36
      $region35: #{checkpoint.1} parent=31 // pred_region
        %s742 = smul.u32 32, %s14
      $region36: #{checkpoint.1} parent=31 // pred_fallthru
        _
    $region32: #{checkpoint.1} parent=5 // pred_fallthru
      _
    %p743 = scmp.le.s32.totalorder 2, %s9
    // Predicated region
    $region37: #{checkpoint.1} parent=5 // pred_check
      %p744 = pneg %p743
    $region38: #{checkpoint.1} parent=5 // pred_check_branch
      %746 = sbr.rel (%p744) target = $region40
    $region39: #{checkpoint.1} parent=5 // pred_region
      %s747 = ssub.s32 %s9, 2
      // Predicated region
      $region41: #{checkpoint.1} parent=39 // pred_check
        %p748 = pneg %p106
      $region42: #{checkpoint.1} parent=39 // pred_check_branch
        %750 = sbr.rel (%p748) target = $region44
      $region43: #{checkpoint.1} parent=39 // pred_region
        %s751 = smul.u32 32, %s15
        %p752 = scmp.lt.s32.totalorder %s751, 63
        %s753 = scalar_select %p752, %s751, 63
        %s754 = smul.addr %s753, 4
        %s755 = scalar_lea.vmem %s3, %s754
      $region44: #{checkpoint.1} parent=39 // pred_fallthru
        _
    $region40: #{checkpoint.1} parent=5 // pred_fallthru
      _
  $region6: #{checkpoint.1} parent=0 // loop_footer
    %s13 = sadd.s32 1, %s9
  $region7: #{checkpoint.1} parent=0 // loop_footer_branch
    %8 = sbr.rel target = $region3
  $region8: #{checkpoint.1} parent=0 // loop_exit
    _

</llo_original>
